<compile_context>
chip_gen: v7x
topology: tpu7x:2x2x1
jax: 0.10.0
libtpu: 0.0.40
codegen_flags: <defaults>
</compile_context>

<pallas_src>
import jax
import jax.numpy as jnp
from jax.experimental import pallas as pl
from jax.experimental.pallas import tpu as pltpu

NUM_MODELS = 3            # len(self.models)
META_IN = NUM_MODELS * 2  # meta_input_size
HID1, HID2 = 64, 32
OUT_DIM = 2
MAX_TILE_B = 4096         # batch rows per grid step (sweep 2048-8192)
MIN_SPLIT_B = 2048        # above this, force >=2 grid steps (v7x dual-TC)
VMEM_LIMIT = 40 * 1024 * 1024  # > v5e/v6e scoped defaults, < v7x 64 MiB physical


def _ensemble_kernel(x_ref, ws_ref, wpf_ref, wfold_ref,
                     w1s_ref, b1_ref,
                     w2_ref, b2_ref,
                     w3_ref, b3_ref,
                     out_ref):
    x = x_ref[...]                                        # (TB, T) f32

    # ---- base models (synthetic detect_anomalies), fused in-kernel ----
    # series_m = tanh(x @ w_series_m): one MXU dot -> (TB, M)
    series = jnp.tanh(jnp.dot(x, ws_ref[...],
                              preferred_element_type=jnp.float32))

    # ---- meta-learner layer 1 ----
    # meta_input = [s0, p0, s1, p1, ...]; the interleave is folded into the
    # de-interleaved weight rows (w1s = W1[0::2]), so no in-kernel stack:
    h1 = jnp.dot(series, w1s_ref[...],
                 preferred_element_type=jnp.float32) + b1_ref[...]

    # point path for all 3 models in one shot:
    #   sum_m point_avg_m * w1p[m] == tanh(x_rep * wp_flat) @ Wfold
    # where x_rep is x tiled along lanes and Wfold rows are w1p[m]/T.
    x_rep = jnp.concatenate([x] * NUM_MODELS, axis=-1)    # (TB, M*T)
    point_act = jnp.tanh(x_rep * wpf_ref[...])            # EUP tanh, 48 lanes
    h1 = h1 + jnp.dot(point_act, wfold_ref[...],
                      preferred_element_type=jnp.float32)
    h1 = jnp.maximum(h1, 0.0)                             # ReLU; Dropout(0.2) -> id

    h2 = jnp.dot(h1, w2_ref[...],
                 preferred_element_type=jnp.float32) + b2_ref[...]
    h2 = jnp.maximum(h2, 0.0)                             # ReLU; Dropout(0.1) -> id

    # final layer writes the real (TB, 2) logits (narrow masked store)
    out_ref[...] = (jnp.dot(h2, w3_ref[...],
                            preferred_element_type=jnp.float32)
                    + b3_ref[...]).astype(out_ref.dtype)


def _cdiv(a, b):
    return -(-a // b)


def _round_up(n, m):
    return (n + m - 1) // m * m


def _choose_tile(B):
    """Balanced batch tiling: minimal padding, >=2 steps for large B (v7x)."""
    n_tiles = _cdiv(B, MAX_TILE_B)
    if n_tiles == 1 and B >= MIN_SPLIT_B:
        n_tiles = 2
    tile_b = _round_up(_cdiv(max(B, 1), n_tiles), 8)
    b_pad = n_tiles * tile_b
    return tile_b, b_pad


def init_params(key):
    """Deterministic meta-learner parameters (Linear layers in (in, out) layout)."""
    ks = jax.random.split(key, 6)
    w1 = jax.random.normal(ks[0], (META_IN, HID1), jnp.float32) * 0.1
    b1 = jax.random.normal(ks[1], (1, HID1), jnp.float32) * 0.01
    w2 = jax.random.normal(ks[2], (HID1, HID2), jnp.float32) * 0.1
    b2 = jax.random.normal(ks[3], (1, HID2), jnp.float32) * 0.01
    w3 = jax.random.normal(ks[4], (HID2, OUT_DIM), jnp.float32) * 0.1
    b3 = jax.random.normal(ks[5], (1, OUT_DIM), jnp.float32) * 0.01
    return dict(w1=w1, b1=b1, w2=w2, b2=b2, w3=w3, b3=b3)


def init_base_models(key, seq_len):
    """Synthetic deterministic stand-ins for models_dict[k].detect_anomalies."""
    ks = jax.random.split(key, 2)
    w_series = jax.random.normal(ks[0], (NUM_MODELS, seq_len), jnp.float32) * 0.2
    w_point = jax.random.normal(ks[1], (NUM_MODELS, seq_len), jnp.float32) * 0.2
    return w_series, w_point


def base_model_predictions(x, w_series, w_point):
    """Plain-JAX glue simulating each base model's detect_anomalies(x)."""
    series = jnp.tanh(jnp.einsum("bt,mt->bm", x, w_series))      # (B, M)
    point = jnp.tanh(x[:, None, :] * w_point[None, :, :])        # (B, M, T)
    return series, point


def stacking_ensemble_forward(x, params, w_series, w_point):
    B, T = x.shape
    # NOTE: at tiny B the fixed pallas_call overhead dominates; a production
    # dispatcher would fall back to plain XLA there.
    tile_b, b_pad = _choose_tile(B)
    if b_pad != B:
        x = jnp.pad(x, ((0, b_pad - B), (0, 0)))      # zero rows sliced off below

    # ---- layout plumbing done once in the wrapper ----
    ws_t = jnp.transpose(w_series)                    # (T, M)   series-dot operand
    w1s = params["w1"][0::2, :]                       # (M, HID1) rows feeding series_k
    w1p = params["w1"][1::2, :]                       # (M, HID1) rows feeding point_avg_k
    wp_flat = w_point.reshape(1, NUM_MODELS * T)      # (1, M*T)
    w_fold = jnp.repeat(w1p / T, T, axis=0)           # (M*T, HID1): row m*T+t = w1p[m]/T

    grid = (b_pad // tile_b,)
    const = lambda i: (0, 0)   # block index never changes -> fetched once, resident

    out = pl.pallas_call(
        _ensemble_kernel,
        out_shape=jax.ShapeDtypeStruct((b_pad, OUT_DIM), jnp.float32),
        grid=grid,
        in_specs=[
            pl.BlockSpec((tile_b, T), lambda i: (i, 0)),         # x (streamed)
            pl.BlockSpec((T, NUM_MODELS), const),                # w_series^T
            pl.BlockSpec((1, NUM_MODELS * T), const),            # wp_flat
            pl.BlockSpec((NUM_MODELS * T, HID1), const),         # w_fold
            pl.BlockSpec((NUM_MODELS, HID1), const),             # w1s
            pl.BlockSpec((1, HID1), const),                      # b1
            pl.BlockSpec((HID1, HID2), const),                   # w2
            pl.BlockSpec((1, HID2), const),                      # b2
            pl.BlockSpec((HID2, OUT_DIM), const),                # w3 (real shape)
            pl.BlockSpec((1, OUT_DIM), const),                   # b3 (real shape)
        ],
        out_specs=pl.BlockSpec((tile_b, OUT_DIM), lambda i: (i, 0)),
        compiler_params=pltpu.CompilerParams(
            dimension_semantics=("parallel",),        # megacore-shard batch (v7x)
            vmem_limit_bytes=VMEM_LIMIT,
        ),
    )(x, ws_t, wp_flat, w_fold, w1s, params["b1"],
      params["w2"], params["b2"], params["w3"], params["b3"])

    return out[:B]   # drop padded rows (bias-propagated garbage lives there)


def reference_forward(x, params, w_series, w_point):
    """Pure-JAX reference mirroring the PyTorch forward (eval-mode dropout)."""
    series, point = base_model_predictions(x, w_series, w_point)
    point_avg = jnp.mean(point, axis=-1)
    # interleave: [s0, p0, s1, p1, ...]
    meta = jnp.stack([series, point_avg], axis=-1).reshape(x.shape[0], META_IN)
    h1 = jnp.maximum(meta @ params["w1"] + params["b1"], 0.0)
    h2 = jnp.maximum(h1 @ params["w2"] + params["b2"], 0.0)
    return h2 @ params["w3"] + params["b3"]


if __name__ == "__main__":
    T = 16  # sequence length
    key = jax.random.PRNGKey(0)
    k_x, k_p, k_m, k_x2 = jax.random.split(key, 4)

    params = init_params(k_p)
    w_series, w_point = init_base_models(k_m, T)

    # small shape implied by the module (batch=2, seq=16)
    x = jax.random.normal(k_x, (2, T), jnp.float32)
    out = jax.block_until_ready(stacking_ensemble_forward(x, params, w_series, w_point))
    ref = reference_forward(x, params, w_series, w_point)
    assert out.shape == (2, OUT_DIM)
    # in-kernel tanh / folded mean may differ from XLA by a few ULP
    assert jnp.allclose(out, ref, atol=5e-5, rtol=5e-5), (out, ref)

    # larger batch exercising the balanced-tile padding path
    x2 = jax.random.normal(k_x2, (520, T), jnp.float32)
    out2 = jax.block_until_ready(stacking_ensemble_forward(x2, params, w_series, w_point))
    ref2 = reference_forward(x2, params, w_series, w_point)
    assert out2.shape == (520, OUT_DIM)
    assert jnp.allclose(out2, ref2, atol=5e-5, rtol=5e-5)

    print("KERNEL_OK")
</pallas_src>

<mosaic_0001>
module attributes {stable_mosaic.version = 11 : i64} {
  func.func @_ensemble_kernel(%arg0: i32, %arg1: memref<8x16xf32, #tpu.memory_space<vmem>>, %arg2: memref<16x3xf32, #tpu.memory_space<vmem>>, %arg3: memref<1x48xf32, #tpu.memory_space<vmem>>, %arg4: memref<48x64xf32, #tpu.memory_space<vmem>>, %arg5: memref<3x64xf32, #tpu.memory_space<vmem>>, %arg6: memref<1x64xf32, #tpu.memory_space<vmem>>, %arg7: memref<64x32xf32, #tpu.memory_space<vmem>>, %arg8: memref<1x32xf32, #tpu.memory_space<vmem>>, %arg9: memref<32x2xf32, #tpu.memory_space<vmem>>, %arg10: memref<1x2xf32, #tpu.memory_space<vmem>>, %arg11: memref<8x2xf32, #tpu.memory_space<vmem>>) attributes {dimension_semantics = [#tpu.dimension_semantics<parallel>], iteration_bounds = array<i64: 1>, scalar_prefetch = 0 : i64, scratch_operands = 0 : i64, tpu.core_type = #tpu.core_type<tc>, window_params = [{transform_indices = @transform_0, window_bounds = array<i64: 8, 16>}, {pipeline_mode = #tpu.pipeline_mode<synchronous>, transform_indices = @transform_1, window_bounds = array<i64: 16, 3>}, {pipeline_mode = #tpu.pipeline_mode<synchronous>, transform_indices = @transform_2, window_bounds = array<i64: 1, 48>}, {pipeline_mode = #tpu.pipeline_mode<synchronous>, transform_indices = @transform_3, window_bounds = array<i64: 48, 64>}, {pipeline_mode = #tpu.pipeline_mode<synchronous>, transform_indices = @transform_4, window_bounds = array<i64: 3, 64>}, {pipeline_mode = #tpu.pipeline_mode<synchronous>, transform_indices = @transform_5, window_bounds = array<i64: 1, 64>}, {pipeline_mode = #tpu.pipeline_mode<synchronous>, transform_indices = @transform_6, window_bounds = array<i64: 64, 32>}, {pipeline_mode = #tpu.pipeline_mode<synchronous>, transform_indices = @transform_7, window_bounds = array<i64: 1, 32>}, {pipeline_mode = #tpu.pipeline_mode<synchronous>, transform_indices = @transform_8, window_bounds = array<i64: 32, 2>}, {pipeline_mode = #tpu.pipeline_mode<synchronous>, transform_indices = @transform_9, window_bounds = array<i64: 1, 2>}, {transform_indices = @transform_10, window_bounds = array<i64: 8, 2>}]} {
    %c0 = arith.constant 0 : index
    %c0_0 = arith.constant 0 : index
    %0 = vector.load %arg1[%c0, %c0_0] : memref<8x16xf32, #tpu.memory_space<vmem>>, vector<8x16xf32>
    %c0_1 = arith.constant 0 : index
    %c0_2 = arith.constant 0 : index
    %1 = vector.load %arg2[%c0_1, %c0_2] : memref<16x3xf32, #tpu.memory_space<vmem>>, vector<16x3xf32>
    %cst = arith.constant dense<0.000000e+00> : vector<8x3xf32>
    %2 = tpu.matmul %0, %1, %cst {dimension_numbers = #tpu.dot_dimension_numbers<[1], [0], [0], [1], [0, 0, 1, 1], [], []>} : vector<8x16xf32>, vector<16x3xf32>, vector<8x3xf32> -> vector<8x3xf32>
    %3 = math.tanh %2 : vector<8x3xf32>
    %c0_3 = arith.constant 0 : index
    %c0_4 = arith.constant 0 : index
    %4 = vector.load %arg5[%c0_3, %c0_4] : memref<3x64xf32, #tpu.memory_space<vmem>>, vector<3x64xf32>
    %cst_5 = arith.constant dense<0.000000e+00> : vector<8x64xf32>
    %5 = tpu.matmul %3, %4, %cst_5 {dimension_numbers = #tpu.dot_dimension_numbers<[1], [0], [0], [1], [0, 0, 1, 1], [], []>} : vector<8x3xf32>, vector<3x64xf32>, vector<8x64xf32> -> vector<8x64xf32>
    %c0_6 = arith.constant 0 : index
    %c0_7 = arith.constant 0 : index
    %6 = vector.load %arg6[%c0_6, %c0_7] : memref<1x64xf32, #tpu.memory_space<vmem>>, vector<1x64xf32>
    %7 = vector.broadcast %6 : vector<1x64xf32> to vector<8x64xf32>
    %8 = arith.addf %5, %7 : vector<8x64xf32>
    %9 = tpu.concatenate %0, %0, %0 in 1 : vector<8x16xf32>, vector<8x16xf32>, vector<8x16xf32> -> vector<8x48xf32>
    %c0_8 = arith.constant 0 : index
    %c0_9 = arith.constant 0 : index
    %10 = vector.load %arg3[%c0_8, %c0_9] : memref<1x48xf32, #tpu.memory_space<vmem>>, vector<1x48xf32>
    %11 = vector.broadcast %10 : vector<1x48xf32> to vector<8x48xf32>
    %12 = arith.mulf %9, %11 : vector<8x48xf32>
    %13 = math.tanh %12 : vector<8x48xf32>
    %c0_10 = arith.constant 0 : index
    %c0_11 = arith.constant 0 : index
    %14 = vector.load %arg4[%c0_10, %c0_11] : memref<48x64xf32, #tpu.memory_space<vmem>>, vector<48x64xf32>
    %cst_12 = arith.constant dense<0.000000e+00> : vector<8x64xf32>
    %15 = tpu.matmul %13, %14, %cst_12 {dimension_numbers = #tpu.dot_dimension_numbers<[1], [0], [0], [1], [0, 0, 1, 1], [], []>} : vector<8x48xf32>, vector<48x64xf32>, vector<8x64xf32> -> vector<8x64xf32>
    %16 = arith.addf %8, %15 : vector<8x64xf32>
    %cst_13 = arith.constant 0.000000e+00 : f32
    %17 = vector.broadcast %cst_13 : f32 to vector<8x64xf32>
    %18 = arith.maximumf %16, %17 : vector<8x64xf32>
    %c0_14 = arith.constant 0 : index
    %c0_15 = arith.constant 0 : index
    %19 = vector.load %arg7[%c0_14, %c0_15] : memref<64x32xf32, #tpu.memory_space<vmem>>, vector<64x32xf32>
    %cst_16 = arith.constant dense<0.000000e+00> : vector<8x32xf32>
    %20 = tpu.matmul %18, %19, %cst_16 {dimension_numbers = #tpu.dot_dimension_numbers<[1], [0], [0], [1], [0, 0, 1, 1], [], []>} : vector<8x64xf32>, vector<64x32xf32>, vector<8x32xf32> -> vector<8x32xf32>
    %c0_17 = arith.constant 0 : index
    %c0_18 = arith.constant 0 : index
    %21 = vector.load %arg8[%c0_17, %c0_18] : memref<1x32xf32, #tpu.memory_space<vmem>>, vector<1x32xf32>
    %22 = vector.broadcast %21 : vector<1x32xf32> to vector<8x32xf32>
    %23 = arith.addf %20, %22 : vector<8x32xf32>
    %cst_19 = arith.constant 0.000000e+00 : f32
    %24 = vector.broadcast %cst_19 : f32 to vector<8x32xf32>
    %25 = arith.maximumf %23, %24 : vector<8x32xf32>
    %c0_20 = arith.constant 0 : index
    %c0_21 = arith.constant 0 : index
    %26 = vector.load %arg9[%c0_20, %c0_21] : memref<32x2xf32, #tpu.memory_space<vmem>>, vector<32x2xf32>
    %cst_22 = arith.constant dense<0.000000e+00> : vector<8x2xf32>
    %27 = tpu.matmul %25, %26, %cst_22 {dimension_numbers = #tpu.dot_dimension_numbers<[1], [0], [0], [1], [0, 0, 1, 1], [], []>} : vector<8x32xf32>, vector<32x2xf32>, vector<8x2xf32> -> vector<8x2xf32>
    %c0_23 = arith.constant 0 : index
    %c0_24 = arith.constant 0 : index
    %28 = vector.load %arg10[%c0_23, %c0_24] : memref<1x2xf32, #tpu.memory_space<vmem>>, vector<1x2xf32>
    %29 = vector.broadcast %28 : vector<1x2xf32> to vector<8x2xf32>
    %30 = arith.addf %27, %29 : vector<8x2xf32>
    %c0_25 = arith.constant 0 : index
    %c0_26 = arith.constant 0 : index
    %31 = vector.load %arg11[%c0_25, %c0_26] : memref<8x2xf32, #tpu.memory_space<vmem>>, vector<8x2xf32>
    tpu.vector_store %arg11[%c0_25, %c0_26], %30 {strides = array<i32>} : memref<8x2xf32, #tpu.memory_space<vmem>>, vector<8x2xf32>,
    return
  }
  func.func @transform_0(%arg0: i32) -> (i32, i32) {
    %c0_i32 = arith.constant 0 : i32
    %c0_i32_0 = arith.constant 0 : i32
    return %arg0, %c0_i32 : i32, i32
  }
  func.func @transform_1(%arg0: i32) -> (i32, i32) {
    %c0_i32 = arith.constant 0 : i32
    %c0_i32_0 = arith.constant 0 : i32
    %c0_i32_1 = arith.constant 0 : i32
    return %c0_i32, %c0_i32_0 : i32, i32
  }
  func.func @transform_2(%arg0: i32) -> (i32, i32) {
    %c0_i32 = arith.constant 0 : i32
    %c0_i32_0 = arith.constant 0 : i32
    %c0_i32_1 = arith.constant 0 : i32
    return %c0_i32, %c0_i32_0 : i32, i32
  }
  func.func @transform_3(%arg0: i32) -> (i32, i32) {
    %c0_i32 = arith.constant 0 : i32
    %c0_i32_0 = arith.constant 0 : i32
    %c0_i32_1 = arith.constant 0 : i32
    return %c0_i32, %c0_i32_0 : i32, i32
  }
  func.func @transform_4(%arg0: i32) -> (i32, i32) {
    %c0_i32 = arith.constant 0 : i32
    %c0_i32_0 = arith.constant 0 : i32
    %c0_i32_1 = arith.constant 0 : i32
    return %c0_i32, %c0_i32_0 : i32, i32
  }
  func.func @transform_5(%arg0: i32) -> (i32, i32) {
    %c0_i32 = arith.constant 0 : i32
    %c0_i32_0 = arith.constant 0 : i32
    %c0_i32_1 = arith.constant 0 : i32
    return %c0_i32, %c0_i32_0 : i32, i32
  }
  func.func @transform_6(%arg0: i32) -> (i32, i32) {
    %c0_i32 = arith.constant 0 : i32
    %c0_i32_0 = arith.constant 0 : i32
    %c0_i32_1 = arith.constant 0 : i32
    return %c0_i32, %c0_i32_0 : i32, i32
  }
  func.func @transform_7(%arg0: i32) -> (i32, i32) {
    %c0_i32 = arith.constant 0 : i32
    %c0_i32_0 = arith.constant 0 : i32
    %c0_i32_1 = arith.constant 0 : i32
    return %c0_i32, %c0_i32_0 : i32, i32
  }
  func.func @transform_8(%arg0: i32) -> (i32, i32) {
    %c0_i32 = arith.constant 0 : i32
    %c0_i32_0 = arith.constant 0 : i32
    %c0_i32_1 = arith.constant 0 : i32
    return %c0_i32, %c0_i32_0 : i32, i32
  }
  func.func @transform_9(%arg0: i32) -> (i32, i32) {
    %c0_i32 = arith.constant 0 : i32
    %c0_i32_0 = arith.constant 0 : i32
    %c0_i32_1 = arith.constant 0 : i32
    return %c0_i32, %c0_i32_0 : i32, i32
  }
  func.func @transform_10(%arg0: i32) -> (i32, i32) {
    %c0_i32 = arith.constant 0 : i32
    %c0_i32_0 = arith.constant 0 : i32
    return %arg0, %c0_i32 : i32, i32
  }
}

</mosaic_0001>

<llo_original>
// kernel: tpu_custom_call.1
$region0: #{tpu_custom_call.1}
  #allocation0 [shape = 'u32[]', space=smem, size = 0x4, offset = 0x4, fixed_abs, tag = 'smem constant byte address 0x4 - core index']
  #allocation1 [shape = 'u32[144,128]{1,0:T(1,128)}', space=vmem, size = 0x12000, scoped, tag = 'internal scratch']
  %s0 = inlined_call_operand.vmem [shape: f32[8,16], index: 0, kind: input, shape index: {}]
  %s1 = inlined_call_operand.vmem [shape: f32[16,3], index: 1, kind: input, shape index: {}]
  %s2 = inlined_call_operand.vmem [shape: f32[1,48], index: 2, kind: input, shape index: {}]
  %s3 = inlined_call_operand.vmem [shape: f32[48,64], index: 3, kind: input, shape index: {}]
  %s4 = inlined_call_operand.vmem [shape: f32[3,64], index: 4, kind: input, shape index: {}]
  %s5 = inlined_call_operand.vmem [shape: f32[1,64], index: 5, kind: input, shape index: {}]
  %s6 = inlined_call_operand.vmem [shape: f32[64,32], index: 6, kind: input, shape index: {}]
  %s7 = inlined_call_operand.vmem [shape: f32[1,32], index: 7, kind: input, shape index: {}]
  %s8 = inlined_call_operand.vmem [shape: f32[32,2], index: 8, kind: input, shape index: {}]
  %s9 = inlined_call_operand.vmem [shape: f32[1,2], index: 9, kind: input, shape index: {}]
  %s10 = inlined_call_operand.vmem [shape: f32[8,2], index: 10, kind: output, shape index: {}]
  %s11 = sld [smem:[#allocation0]]
  $region50: #{tpu_custom_call.1} parent=0
    _
  %s13 = ssub.s32 1, %s11
  %s14 = scalar_select 0, %s13, %s11
  // Predicated region
  $region2: #{tpu_custom_call.1} parent=0 // pred_check
    _
  $region3: #{tpu_custom_call.1} parent=0 // pred_check_branch
    %16 = sbr.rel (0) target = $region5
  $region4: #{tpu_custom_call.1} parent=0 // pred_region
    _
  $region5: #{tpu_custom_call.1} parent=0 // pred_fallthru
    _
  // Predicated region
  $region6: #{tpu_custom_call.1} parent=0 // pred_check
    _
  $region7: #{tpu_custom_call.1} parent=0 // pred_check_branch
    %18 = sbr.rel (0) target = $region9
  $region8: #{tpu_custom_call.1} parent=0 // pred_region
    _
  $region9: #{tpu_custom_call.1} parent=0 // pred_fallthru
    _
  // Predicated region
  $region10: #{tpu_custom_call.1} parent=0 // pred_check
    _
  $region11: #{tpu_custom_call.1} parent=0 // pred_check_branch
    %20 = sbr.rel (0) target = $region13
  $region12: #{tpu_custom_call.1} parent=0 // pred_region
    _
  $region13: #{tpu_custom_call.1} parent=0 // pred_fallthru
    _
  // Predicated region
  $region14: #{tpu_custom_call.1} parent=0 // pred_check
    _
  $region15: #{tpu_custom_call.1} parent=0 // pred_check_branch
    %22 = sbr.rel (0) target = $region17
  $region16: #{tpu_custom_call.1} parent=0 // pred_region
    _
  $region17: #{tpu_custom_call.1} parent=0 // pred_fallthru
    _
  // Predicated region
  $region18: #{tpu_custom_call.1} parent=0 // pred_check
    _
  $region19: #{tpu_custom_call.1} parent=0 // pred_check_branch
    %24 = sbr.rel (0) target = $region21
  $region20: #{tpu_custom_call.1} parent=0 // pred_region
    _
  $region21: #{tpu_custom_call.1} parent=0 // pred_fallthru
    _
  // Predicated region
  $region22: #{tpu_custom_call.1} parent=0 // pred_check
    _
  $region23: #{tpu_custom_call.1} parent=0 // pred_check_branch
    %26 = sbr.rel (0) target = $region25
  $region24: #{tpu_custom_call.1} parent=0 // pred_region
    _
  $region25: #{tpu_custom_call.1} parent=0 // pred_fallthru
    _
  // Predicated region
  $region26: #{tpu_custom_call.1} parent=0 // pred_check
    _
  $region27: #{tpu_custom_call.1} parent=0 // pred_check_branch
    %28 = sbr.rel (0) target = $region29
  $region28: #{tpu_custom_call.1} parent=0 // pred_region
    _
  $region29: #{tpu_custom_call.1} parent=0 // pred_fallthru
    _
  // Predicated region
  $region30: #{tpu_custom_call.1} parent=0 // pred_check
    _
  $region31: #{tpu_custom_call.1} parent=0 // pred_check_branch
    %30 = sbr.rel (0) target = $region33
  $region32: #{tpu_custom_call.1} parent=0 // pred_region
    _
  $region33: #{tpu_custom_call.1} parent=0 // pred_fallthru
    _
  // Predicated region
  $region34: #{tpu_custom_call.1} parent=0 // pred_check
    _
  $region35: #{tpu_custom_call.1} parent=0 // pred_check_branch
    %32 = sbr.rel (0) target = $region37
  $region36: #{tpu_custom_call.1} parent=0 // pred_region
    _
  $region37: #{tpu_custom_call.1} parent=0 // pred_fallthru
    _
  // Predicated region
  $region38: #{tpu_custom_call.1} parent=0 // pred_check
    _
  $region39: #{tpu_custom_call.1} parent=0 // pred_check_branch
    %34 = sbr.rel (0) target = $region41
  $region40: #{tpu_custom_call.1} parent=0 // pred_region
    _
  $region41: #{tpu_custom_call.1} parent=0 // pred_fallthru
    _
  %v35 = vld [vmem:[%s0] sm:$0xff]
  %v36 = vld [vmem:[%s1] sm:$0xff]
  %v37 = vld [vmem:[%s1 + $0x8] sm:$0xff]
  %vm38 = vcmask 130048
  %v40 = vsel %vm38, %v35, 0
  %42 = vmatprep.subr.mxu0 0.0
  %43 = vmatpush1.msra.mxu0 %v36
  %44 = vmatprep.subr.mxu0 0.0
  %45 = vmatpush1.msra.mxu0 %v37
  %46 = vmatprep.subr.mxu0 0.0
  %47 = vmatpush1.msra.mxu0 0.0
  %48 = vmatprep.subr.mxu0 0.0
  %49 = vmatpush1.msra.mxu0 0.0
  %50 = vmatprep.subr.mxu0 0.0
  %51 = vmatpush1.msra.mxu0 0.0
  %52 = vmatprep.subr.mxu0 0.0
  %53 = vmatpush1.msra.mxu0 0.0
  %54 = vmatprep.subr.mxu0 0.0
  %55 = vmatpush1.msra.mxu0 0.0
  %56 = vmatprep.subr.mxu0 0.0
  %57 = vmatpush1.msra.mxu0 0.0
  %58 = vmatprep.subr.mxu0 0.0
  %59 = vmatpush1.msra.mxu0 0.0
  %60 = vmatprep.subr.mxu0 0.0
  %61 = vmatpush1.msra.mxu0 0.0
  %62 = vmatprep.subr.mxu0 0.0
  %63 = vmatpush1.msra.mxu0 0.0
  %64 = vmatprep.subr.mxu0 0.0
  %65 = vmatpush1.msra.mxu0 0.0
  %66 = vmatprep.subr.mxu0 0.0
  %67 = vmatpush1.msra.mxu0 0.0
  %68 = vmatprep.subr.mxu0 0.0
  %69 = vmatpush1.msra.mxu0 0.0
  %70 = vmatprep.subr.mxu0 0.0
  %71 = vmatpush1.msra.mxu0 0.0
  %72 = vmatprep.subr.mxu0 0.0
  %73 = vmatpush1.msra.mxu0 0.0
  %74 = vmatprep.subr.mxu0 0.0
  %75 = vmatpush1.msra.mxu0 0.0
  %76 = vmatprep.subr.mxu0 0.0
  %77 = vmatpush1.msra.mxu0 0.0
  %78 = vmatprep.subr.mxu0 0.0
  %79 = vmatpush1.msra.mxu0 0.0
  %80 = vmatprep.subr.mxu0 0.0
  %81 = vmatpush1.msra.mxu0 0.0
  %82 = vmatprep.subr.mxu0 0.0
  %83 = vmatpush1.msra.mxu0 0.0
  %84 = vmatprep.subr.mxu0 0.0
  %85 = vmatpush1.msra.mxu0 0.0
  %86 = vmatprep.subr.mxu0 0.0
  %87 = vmatpush1.msra.mxu0 0.0
  %88 = vmatprep.subr.mxu0 0.0
  %89 = vmatpush1.msra.mxu0 0.0
  %90 = vmatprep.subr.mxu0 0.0
  %91 = vmatpush1.msra.mxu0 0.0
  %92 = vmatprep.subr.mxu0 0.0
  %93 = vmatpush1.msra.mxu0 0.0
  %94 = vmatprep.subr.mxu0 0.0
  %95 = vmatpush1.msra.mxu0 0.0
  %96 = vmatprep.subr.mxu0 0.0
  %97 = vmatpush1.msra.mxu0 0.0
  %98 = vmatprep.subr.mxu0 0.0
  %99 = vmatpush1.msra.mxu0 0.0
  %100 = vmatprep.subr.mxu0 0.0
  %101 = vmatpush1.msra.mxu0 0.0
  %102 = vmatprep.subr.mxu0 0.0
  %103 = vmatpush1.msra.mxu0 0.0
  %104 = vmatprep.subr.mxu0 0.0
  %105 = vmatpush1.msra.mxu0 0.0
  %106 = vmatprep.mubr.f32.mxu0 0.0
  %107 = vmatmul.mubr.f32.gmra.mrb[0].mxu0 %v40
  %v108 = vpop.f32.mrb[0].mxu0
  %v109 = vadd.f32 0.0, %v108
  %v110 = vpop.f32.mrb[0].mxu0
  %111 = vdwg.mxu0
  %v112 = vtanh.pop %v109
  %v113 = vld [vmem:[%s4] sm:$0x7]
  %v114 = vld [vmem:[%s5] sm:$0x1]
  %v116 = vlaneseq
  %v117 = vshrl.u32 %v116, 7
  %v118 = vsub.s32 0, %v117
  %v119 = vrot.slane %v114, %v118
  %vm121 = vcmask 23552
  %v123 = vsel %vm121, %v112, 0
  %vm125 = vcmask 1042432
  %v127 = vsel %vm125, %v113, 0
  %129 = vmatprep.subr.mxu0 0.0
  %130 = vmatpush1.msra.mxu0 %v127
  %131 = vmatprep.subr.mxu0 0.0
  %132 = vmatpush1.msra.mxu0 0.0
  %133 = vmatprep.subr.mxu0 0.0
  %134 = vmatpush1.msra.mxu0 0.0
  %135 = vmatprep.subr.mxu0 0.0
  %136 = vmatpush1.msra.mxu0 0.0
  %137 = vmatprep.subr.mxu0 0.0
  %138 = vmatpush1.msra.mxu0 0.0
  %139 = vmatprep.subr.mxu0 0.0
  %140 = vmatpush1.msra.mxu0 0.0
  %141 = vmatprep.subr.mxu0 0.0
  %142 = vmatpush1.msra.mxu0 0.0
  %143 = vmatprep.subr.mxu0 0.0
  %144 = vmatpush1.msra.mxu0 0.0
  %145 = vmatprep.subr.mxu0 0.0
  %146 = vmatpush1.msra.mxu0 0.0
  %147 = vmatprep.subr.mxu0 0.0
  %148 = vmatpush1.msra.mxu0 0.0
  %149 = vmatprep.subr.mxu0 0.0
  %150 = vmatpush1.msra.mxu0 0.0
  %151 = vmatprep.subr.mxu0 0.0
  %152 = vmatpush1.msra.mxu0 0.0
  %153 = vmatprep.subr.mxu0 0.0
  %154 = vmatpush1.msra.mxu0 0.0
  %155 = vmatprep.subr.mxu0 0.0
  %156 = vmatpush1.msra.mxu0 0.0
  %157 = vmatprep.subr.mxu0 0.0
  %158 = vmatpush1.msra.mxu0 0.0
  %159 = vmatprep.subr.mxu0 0.0
  %160 = vmatpush1.msra.mxu0 0.0
  %161 = vmatprep.subr.mxu0 0.0
  %162 = vmatpush1.msra.mxu0 0.0
  %163 = vmatprep.subr.mxu0 0.0
  %164 = vmatpush1.msra.mxu0 0.0
  %165 = vmatprep.subr.mxu0 0.0
  %166 = vmatpush1.msra.mxu0 0.0
  %167 = vmatprep.subr.mxu0 0.0
  %168 = vmatpush1.msra.mxu0 0.0
  %169 = vmatprep.subr.mxu0 0.0
  %170 = vmatpush1.msra.mxu0 0.0
  %171 = vmatprep.subr.mxu0 0.0
  %172 = vmatpush1.msra.mxu0 0.0
  %173 = vmatprep.subr.mxu0 0.0
  %174 = vmatpush1.msra.mxu0 0.0
  %175 = vmatprep.subr.mxu0 0.0
  %176 = vmatpush1.msra.mxu0 0.0
  %177 = vmatprep.subr.mxu0 0.0
  %178 = vmatpush1.msra.mxu0 0.0
  %179 = vmatprep.subr.mxu0 0.0
  %180 = vmatpush1.msra.mxu0 0.0
  %181 = vmatprep.subr.mxu0 0.0
  %182 = vmatpush1.msra.mxu0 0.0
  %183 = vmatprep.subr.mxu0 0.0
  %184 = vmatpush1.msra.mxu0 0.0
  %185 = vmatprep.subr.mxu0 0.0
  %186 = vmatpush1.msra.mxu0 0.0
  %187 = vmatprep.subr.mxu0 0.0
  %188 = vmatpush1.msra.mxu0 0.0
  %189 = vmatprep.subr.mxu0 0.0
  %190 = vmatpush1.msra.mxu0 0.0
  %191 = vmatprep.subr.mxu0 0.0
  %192 = vmatpush1.msra.mxu0 0.0
  %193 = vmatprep.mubr.f32.mxu0 0.0
  %194 = vmatmul.mubr.f32.gmra.mrb[0].mxu0 %v123
  %v195 = vpop.f32.mrb[0].mxu0
  %v196 = vadd.f32 %v119, %v195
  %v197 = vpop.f32.mrb[0].mxu0
  %198 = vdwg.mxu0
  %199 = vrot.lane.b32.xlu0 %v35, 16
  %v200 = vpop.permute.xlu0 %199
  %202 = vrot.lane.b32.xlu0 %v35, 32
  %v203 = vpop.permute.xlu0 %202
  %v205 = vsel %vm38, %v35, %v200
  %vm206 = vcmask 261120
  %v207 = vsel %vm206, %v205, %v203
  %v208 = vld [vmem:[%s2] sm:$0x1]
  %v210 = vlaneseq
  %v211 = vshrl.u32 %v210, 7
  %v212 = vsub.s32 0, %v211
  %v213 = vrot.slane %v208, %v212
  %v215 = vmul.f32 %v207, %v213
  %v216 = vtanh.pop %v215
  %v217 = vld [vmem:[%s3] sm:$0xff]
  %v218 = vld [vmem:[%s3 + $0x8] sm:$0xff]
  %v219 = vld [vmem:[%s3 + $0x10] sm:$0xff]
  %v220 = vld [vmem:[%s3 + $0x18] sm:$0xff]
  %v221 = vld [vmem:[%s3 + $0x20] sm:$0xff]
  %v222 = vld [vmem:[%s3 + $0x28] sm:$0xff]
  %vm223 = vcmask 392192
  %v225 = vsel %vm223, %v216, 0
  %227 = vmatprep.subr.mxu0 0.0
  %228 = vmatpush1.msra.mxu0 %v217
  %229 = vmatprep.subr.mxu0 0.0
  %230 = vmatpush1.msra.mxu0 %v218
  %231 = vmatprep.subr.mxu0 0.0
  %232 = vmatpush1.msra.mxu0 %v219
  %233 = vmatprep.subr.mxu0 0.0
  %234 = vmatpush1.msra.mxu0 %v220
  %235 = vmatprep.subr.mxu0 0.0
  %236 = vmatpush1.msra.mxu0 %v221
  %237 = vmatprep.subr.mxu0 0.0
  %238 = vmatpush1.msra.mxu0 %v222
  %239 = vmatprep.subr.mxu0 0.0
  %240 = vmatpush1.msra.mxu0 0.0
  %241 = vmatprep.subr.mxu0 0.0
  %242 = vmatpush1.msra.mxu0 0.0
  %243 = vmatprep.subr.mxu0 0.0
  %244 = vmatpush1.msra.mxu0 0.0
  %245 = vmatprep.subr.mxu0 0.0
  %246 = vmatpush1.msra.mxu0 0.0
  %247 = vmatprep.subr.mxu0 0.0
  %248 = vmatpush1.msra.mxu0 0.0
  %249 = vmatprep.subr.mxu0 0.0
  %250 = vmatpush1.msra.mxu0 0.0
  %251 = vmatprep.subr.mxu0 0.0
  %252 = vmatpush1.msra.mxu0 0.0
  %253 = vmatprep.subr.mxu0 0.0
  %254 = vmatpush1.msra.mxu0 0.0
  %255 = vmatprep.subr.mxu0 0.0
  %256 = vmatpush1.msra.mxu0 0.0
  %257 = vmatprep.subr.mxu0 0.0
  %258 = vmatpush1.msra.mxu0 0.0
  %259 = vmatprep.subr.mxu0 0.0
  %260 = vmatpush1.msra.mxu0 0.0
  %261 = vmatprep.subr.mxu0 0.0
  %262 = vmatpush1.msra.mxu0 0.0
  %263 = vmatprep.subr.mxu0 0.0
  %264 = vmatpush1.msra.mxu0 0.0
  %265 = vmatprep.subr.mxu0 0.0
  %266 = vmatpush1.msra.mxu0 0.0
  %267 = vmatprep.subr.mxu0 0.0
  %268 = vmatpush1.msra.mxu0 0.0
  %269 = vmatprep.subr.mxu0 0.0
  %270 = vmatpush1.msra.mxu0 0.0
  %271 = vmatprep.subr.mxu0 0.0
  %272 = vmatpush1.msra.mxu0 0.0
  %273 = vmatprep.subr.mxu0 0.0
  %274 = vmatpush1.msra.mxu0 0.0
  %275 = vmatprep.subr.mxu0 0.0
  %276 = vmatpush1.msra.mxu0 0.0
  %277 = vmatprep.subr.mxu0 0.0
  %278 = vmatpush1.msra.mxu0 0.0
  %279 = vmatprep.subr.mxu0 0.0
  %280 = vmatpush1.msra.mxu0 0.0
  %281 = vmatprep.subr.mxu0 0.0
  %282 = vmatpush1.msra.mxu0 0.0
  %283 = vmatprep.subr.mxu0 0.0
  %284 = vmatpush1.msra.mxu0 0.0
  %285 = vmatprep.subr.mxu0 0.0
  %286 = vmatpush1.msra.mxu0 0.0
  %287 = vmatprep.subr.mxu0 0.0
  %288 = vmatpush1.msra.mxu0 0.0
  %289 = vmatprep.subr.mxu0 0.0
  %290 = vmatpush1.msra.mxu0 0.0
  %291 = vmatprep.mubr.f32.mxu0 0.0
  %292 = vmatmul.mubr.f32.gmra.mrb[0].mxu0 %v225
  %v293 = vpop.f32.mrb[0].mxu0
  %v294 = vadd.f32 0.0, %v293
  %v295 = vpop.f32.mrb[0].mxu0
  %296 = vdwg.mxu0
  %v297 = vadd.f32 %v196, %v294
  %v298 = vmax.f32 %v297, 0.0
  %v299 = vld [vmem:[%s6] sm:$0xff]
  %v300 = vld [vmem:[%s6 + $0x8] sm:$0xff]
  %v301 = vld [vmem:[%s6 + $0x10] sm:$0xff]
  %v302 = vld [vmem:[%s6 + $0x18] sm:$0xff]
  %v303 = vld [vmem:[%s6 + $0x20] sm:$0xff]
  %v304 = vld [vmem:[%s6 + $0x28] sm:$0xff]
  %v305 = vld [vmem:[%s6 + $0x30] sm:$0xff]
  %v306 = vld [vmem:[%s6 + $0x38] sm:$0xff]
  %v307 = vld [vmem:[%s7] sm:$0x1]
  %v309 = vlaneseq
  %v310 = vshrl.u32 %v309, 7
  %v311 = vsub.s32 0, %v310
  %v312 = vrot.slane %v307, %v311
  %vm314 = vcmask 523264
  %v316 = vsel %vm314, %v298, 0
  %318 = vmatprep.subr.mxu0 0.0
  %319 = vmatpush1.msra.mxu0 %v299
  %320 = vmatprep.subr.mxu0 0.0
  %321 = vmatpush1.msra.mxu0 %v300
  %322 = vmatprep.subr.mxu0 0.0
  %323 = vmatpush1.msra.mxu0 %v301
  %324 = vmatprep.subr.mxu0 0.0
  %325 = vmatpush1.msra.mxu0 %v302
  %326 = vmatprep.subr.mxu0 0.0
  %327 = vmatpush1.msra.mxu0 %v303
  %328 = vmatprep.subr.mxu0 0.0
  %329 = vmatpush1.msra.mxu0 %v304
  %330 = vmatprep.subr.mxu0 0.0
  %331 = vmatpush1.msra.mxu0 %v305
  %332 = vmatprep.subr.mxu0 0.0
  %333 = vmatpush1.msra.mxu0 %v306
  %334 = vmatprep.subr.mxu0 0.0
  %335 = vmatpush1.msra.mxu0 0.0
  %336 = vmatprep.subr.mxu0 0.0
  %337 = vmatpush1.msra.mxu0 0.0
  %338 = vmatprep.subr.mxu0 0.0
  %339 = vmatpush1.msra.mxu0 0.0
  %340 = vmatprep.subr.mxu0 0.0
  %341 = vmatpush1.msra.mxu0 0.0
  %342 = vmatprep.subr.mxu0 0.0
  %343 = vmatpush1.msra.mxu0 0.0
  %344 = vmatprep.subr.mxu0 0.0
  %345 = vmatpush1.msra.mxu0 0.0
  %346 = vmatprep.subr.mxu0 0.0
  %347 = vmatpush1.msra.mxu0 0.0
  %348 = vmatprep.subr.mxu0 0.0
  %349 = vmatpush1.msra.mxu0 0.0
  %350 = vmatprep.subr.mxu0 0.0
  %351 = vmatpush1.msra.mxu0 0.0
  %352 = vmatprep.subr.mxu0 0.0
  %353 = vmatpush1.msra.mxu0 0.0
  %354 = vmatprep.subr.mxu0 0.0
  %355 = vmatpush1.msra.mxu0 0.0
  %356 = vmatprep.subr.mxu0 0.0
  %357 = vmatpush1.msra.mxu0 0.0
  %358 = vmatprep.subr.mxu0 0.0
  %359 = vmatpush1.msra.mxu0 0.0
  %360 = vmatprep.subr.mxu0 0.0
  %361 = vmatpush1.msra.mxu0 0.0
  %362 = vmatprep.subr.mxu0 0.0
  %363 = vmatpush1.msra.mxu0 0.0
  %364 = vmatprep.subr.mxu0 0.0
  %365 = vmatpush1.msra.mxu0 0.0
  %366 = vmatprep.subr.mxu0 0.0
  %367 = vmatpush1.msra.mxu0 0.0
  %368 = vmatprep.subr.mxu0 0.0
  %369 = vmatpush1.msra.mxu0 0.0
  %370 = vmatprep.subr.mxu0 0.0
  %371 = vmatpush1.msra.mxu0 0.0
  %372 = vmatprep.subr.mxu0 0.0
  %373 = vmatpush1.msra.mxu0 0.0
  %374 = vmatprep.subr.mxu0 0.0
  %375 = vmatpush1.msra.mxu0 0.0
  %376 = vmatprep.subr.mxu0 0.0
  %377 = vmatpush1.msra.mxu0 0.0
  %378 = vmatprep.subr.mxu0 0.0
  %379 = vmatpush1.msra.mxu0 0.0
  %380 = vmatprep.subr.mxu0 0.0
  %381 = vmatpush1.msra.mxu0 0.0
  %382 = vmatprep.mubr.f32.mxu0 0.0
  %383 = vmatmul.mubr.f32.gmra.mrb[0].mxu0 %v316
  %v384 = vpop.f32.mrb[0].mxu0
  %v385 = vadd.f32 %v312, %v384
  %v386 = vpop.f32.mrb[0].mxu0
  %387 = vdwg.mxu0
  %v388 = vmax.f32 %v385, 0.0
  %v389 = vld [vmem:[%s8] sm:$0xff]
  %v390 = vld [vmem:[%s8 + $0x8] sm:$0xff]
  %v391 = vld [vmem:[%s8 + $0x10] sm:$0xff]
  %v392 = vld [vmem:[%s8 + $0x18] sm:$0xff]
  %v393 = vld [vmem:[%s9] sm:$0x1]
  %v395 = vlaneseq
  %v396 = vshrl.u32 %v395, 7
  %v397 = vsub.s32 0, %v396
  %v398 = vrot.slane %v393, %v397
  %v401 = vsel %vm206, %v388, 0
  %403 = vmatprep.subr.mxu0 0.0
  %404 = vmatpush1.msra.mxu0 %v389
  %405 = vmatprep.subr.mxu0 0.0
  %406 = vmatpush1.msra.mxu0 %v390
  %407 = vmatprep.subr.mxu0 0.0
  %408 = vmatpush1.msra.mxu0 %v391
  %409 = vmatprep.subr.mxu0 0.0
  %410 = vmatpush1.msra.mxu0 %v392
  %411 = vmatprep.subr.mxu0 0.0
  %412 = vmatpush1.msra.mxu0 0.0
  %413 = vmatprep.subr.mxu0 0.0
  %414 = vmatpush1.msra.mxu0 0.0
  %415 = vmatprep.subr.mxu0 0.0
  %416 = vmatpush1.msra.mxu0 0.0
  %417 = vmatprep.subr.mxu0 0.0
  %418 = vmatpush1.msra.mxu0 0.0
  %419 = vmatprep.subr.mxu0 0.0
  %420 = vmatpush1.msra.mxu0 0.0
  %421 = vmatprep.subr.mxu0 0.0
  %422 = vmatpush1.msra.mxu0 0.0
  %423 = vmatprep.subr.mxu0 0.0
  %424 = vmatpush1.msra.mxu0 0.0
  %425 = vmatprep.subr.mxu0 0.0
  %426 = vmatpush1.msra.mxu0 0.0
  %427 = vmatprep.subr.mxu0 0.0
  %428 = vmatpush1.msra.mxu0 0.0
  %429 = vmatprep.subr.mxu0 0.0
  %430 = vmatpush1.msra.mxu0 0.0
  %431 = vmatprep.subr.mxu0 0.0
  %432 = vmatpush1.msra.mxu0 0.0
  %433 = vmatprep.subr.mxu0 0.0
  %434 = vmatpush1.msra.mxu0 0.0
  %435 = vmatprep.subr.mxu0 0.0
  %436 = vmatpush1.msra.mxu0 0.0
  %437 = vmatprep.subr.mxu0 0.0
  %438 = vmatpush1.msra.mxu0 0.0
  %439 = vmatprep.subr.mxu0 0.0
  %440 = vmatpush1.msra.mxu0 0.0
  %441 = vmatprep.subr.mxu0 0.0
  %442 = vmatpush1.msra.mxu0 0.0
  %443 = vmatprep.subr.mxu0 0.0
  %444 = vmatpush1.msra.mxu0 0.0
  %445 = vmatprep.subr.mxu0 0.0
  %446 = vmatpush1.msra.mxu0 0.0
  %447 = vmatprep.subr.mxu0 0.0
  %448 = vmatpush1.msra.mxu0 0.0
  %449 = vmatprep.subr.mxu0 0.0
  %450 = vmatpush1.msra.mxu0 0.0
  %451 = vmatprep.subr.mxu0 0.0
  %452 = vmatpush1.msra.mxu0 0.0
  %453 = vmatprep.subr.mxu0 0.0
  %454 = vmatpush1.msra.mxu0 0.0
  %455 = vmatprep.subr.mxu0 0.0
  %456 = vmatpush1.msra.mxu0 0.0
  %457 = vmatprep.subr.mxu0 0.0
  %458 = vmatpush1.msra.mxu0 0.0
  %459 = vmatprep.subr.mxu0 0.0
  %460 = vmatpush1.msra.mxu0 0.0
  %461 = vmatprep.subr.mxu0 0.0
  %462 = vmatpush1.msra.mxu0 0.0
  %463 = vmatprep.subr.mxu0 0.0
  %464 = vmatpush1.msra.mxu0 0.0
  %465 = vmatprep.subr.mxu0 0.0
  %466 = vmatpush1.msra.mxu0 0.0
  %467 = vmatprep.mubr.f32.mxu0 0.0
  %468 = vmatmul.mubr.f32.gmra.mrb[0].mxu0 %v401
  %v469 = vpop.f32.mrb[0].mxu0
  %v470 = vadd.f32 %v398, %v469
  %v471 = vpop.f32.mrb[0].mxu0
  %472 = vdwg.mxu0
  %vm473 = vcmask 15360
  %474 = vst.msk [vmem:[%s10] sm:$0xff] %vm473, %v470
  // Predicated region
  $region42: #{tpu_custom_call.1} parent=0 // pred_check
    _
  $region43: #{tpu_custom_call.1} parent=0 // pred_check_branch
    %476 = sbr.rel (0) target = $region45
  $region44: #{tpu_custom_call.1} parent=0 // pred_region
    _
  $region45: #{tpu_custom_call.1} parent=0 // pred_fallthru
    _
  // Predicated region
  $region46: #{tpu_custom_call.1} parent=0 // pred_check
    _
  $region47: #{tpu_custom_call.1} parent=0 // pred_check_branch
    %478 = sbr.rel (0) target = $region49
  $region48: #{tpu_custom_call.1} parent=0 // pred_region
    _
  $region49: #{tpu_custom_call.1} parent=0 // pred_fallthru
    _

</llo_original>
